<compile_context>
chip_gen: v6e
topology: v6e:2x2x1
jax: 0.10.0
libtpu: 0.0.40
codegen_flags: <defaults>
</compile_context>

<pallas_src>
import functools
import math

import numpy as np
import jax
import jax.numpy as jnp
from jax import lax
from jax.experimental import pallas as pl
from jax.experimental.pallas import tpu as pltpu


# ----------------------------------------------------------------------------
# Generation-aware budgets
# ----------------------------------------------------------------------------
@functools.lru_cache(maxsize=None)
def _tpu_budget():
    """Returns (vmem_limit_bytes, default token-tile size)."""
    cap = 128 * 1024 * 1024
    try:
        cap = int(pltpu.get_tpu_info().vmem_capacity_bytes)
    except Exception:
        pass
    if cap <= 64 * 1024 * 1024:          # v7x-class: 64 MiB VMEM per TensorCore
        return 56 * 1024 * 1024, 256
    return 100 * 1024 * 1024, 512        # v5e / v6e: 128 MiB VMEM


def _cparams(n_axes):
    vmem, _ = _tpu_budget()
    return pltpu.CompilerParams(
        dimension_semantics=("parallel",) * n_axes,
        vmem_limit_bytes=vmem)


def _row_tiling(M):
    """Token-tile size TM and number of row blocks (ragged last block allowed)."""
    _, tm = _tpu_budget()
    if M <= tm:
        return M, 1
    return tm, pl.cdiv(M, tm)


# ----------------------------------------------------------------------------
# Shared math helpers (used in kernels and in the pure-JAX reference)
# ----------------------------------------------------------------------------
def _gelu_exact(x):
    # PyTorch nn.GELU() default: exact erf-based GELU.
    return 0.5 * x * (1.0 + lax.erf(x * 0.7071067811865476))


def _layernorm_math(x, gamma, beta, eps=1e-5):
    mu = jnp.mean(x, axis=-1, keepdims=True)
    xc = x - mu
    var = jnp.mean(xc * xc, axis=-1, keepdims=True)
    return xc * lax.rsqrt(var + eps) * gamma + beta


# ----------------------------------------------------------------------------
# Kernels
# ----------------------------------------------------------------------------
def _patch_embed_kernel(p_ref, w_ref, b_ref, pos_ref, o_ref):
    # p: (1, TN, patch_dim)  w: (patch_dim, D)  b: (1, D)  pos: (TN, D)
    y = jnp.dot(p_ref[0], w_ref[...], preferred_element_type=jnp.float32)
    y = y + b_ref[...].astype(jnp.float32) + pos_ref[...].astype(jnp.float32)
    o_ref[0] = y.astype(o_ref.dtype)


def _ln_linear_kernel(x_ref, g_ref, bln_ref, w_ref, b_ref, o_ref):
    # LayerNorm (f32) fused into the consuming matmul:  (LN(x)) @ w + b
    x = x_ref[...].astype(jnp.float32)
    h = _layernorm_math(x, g_ref[...].astype(jnp.float32),
                        bln_ref[...].astype(jnp.float32))
    y = jnp.dot(h.astype(w_ref.dtype), w_ref[...],
                preferred_element_type=jnp.float32)
    o_ref[...] = (y + b_ref[...].astype(jnp.float32)).astype(o_ref.dtype)


def _linear_residual_kernel(x_ref, w_ref, b_ref, r_ref, o_ref):
    # o = x @ w + b + residual
    y = jnp.dot(x_ref[...], w_ref[...], preferred_element_type=jnp.float32)
    y = y + b_ref[...].astype(jnp.float32) + r_ref[...].astype(jnp.float32)
    o_ref[...] = y.astype(o_ref.dtype)


def _ln_mlp_kernel(x_ref, g_ref, bln_ref, w1_ref, b1_ref, w2_ref, b2_ref, o_ref):
    # Fused: LN2 -> fc1 -> GELU -> fc2 -> +residual (residual is the pre-LN x).
    # Dropout p = 0.0 -> identity.
    x = x_ref[...].astype(jnp.float32)
    h = _layernorm_math(x, g_ref[...].astype(jnp.float32),
                        bln_ref[...].astype(jnp.float32))
    h = jnp.dot(h.astype(w1_ref.dtype), w1_ref[...],
                preferred_element_type=jnp.float32)
    h = _gelu_exact(h + b1_ref[...].astype(jnp.float32))
    y = jnp.dot(h.astype(w2_ref.dtype), w2_ref[...],
                preferred_element_type=jnp.float32)
    y = y + b2_ref[...].astype(jnp.float32) + x
    o_ref[...] = y.astype(o_ref.dtype)


def _layernorm_kernel(x_ref, g_ref, b_ref, o_ref):
    x = x_ref[...].astype(jnp.float32)
    o_ref[...] = _layernorm_math(
        x, g_ref[...].astype(jnp.float32),
        b_ref[...].astype(jnp.float32)).astype(o_ref.dtype)


def _make_attention_kernel(num_heads, head_dim, scale):
    """One grid step per batch element; reads (1, N, 3D) QKV, writes (1, N, D)."""
    D = num_heads * head_dim

    def kernel(qkv_ref, o_ref):
        qkv = qkv_ref[0]                         # (N, 3D), native dtype
        outs = []
        for h in range(num_heads):               # static unroll over heads
            lo = h * head_dim
            q = qkv[:, lo:lo + head_dim]
            k = qkv[:, D + lo:D + lo + head_dim]
            v = qkv[:, 2 * D + lo:2 * D + lo + head_dim]
            s = lax.dot_general(q, k, (((1,), (1,)), ((), ())),
                                preferred_element_type=jnp.float32) * scale
            s = s - jnp.max(s, axis=-1, keepdims=True)
            p = jnp.exp(s)
            p = p / jnp.sum(p, axis=-1, keepdims=True)
            outs.append(jnp.dot(p.astype(v.dtype), v,
                                preferred_element_type=jnp.float32))
        # Single lane-dense full-width store of all heads (token-major layout).
        o_ref[0] = jnp.concatenate(outs, axis=-1).astype(o_ref.dtype)

    return kernel


# ----------------------------------------------------------------------------
# Pallas wrappers
# ----------------------------------------------------------------------------
def patch_embed_pallas(patches, w, b, pos):
    """patches: (B, N, patch_dim) -> (B, N, D) with +bias and +pos fused."""
    B, N, PD = patches.shape
    D = w.shape[1]
    TN, nblk = _row_tiling(N)
    return pl.pallas_call(
        _patch_embed_kernel,
        out_shape=jax.ShapeDtypeStruct((B, N, D), patches.dtype),
        grid_spec=pltpu.PrefetchScalarGridSpec(
            num_scalar_prefetch=0,
            grid=(B, nblk),
            in_specs=[
                pl.BlockSpec((1, TN, PD), lambda b_, j: (b_, j, 0)),
                pl.BlockSpec((PD, D), lambda b_, j: (0, 0)),     # resident
                pl.BlockSpec((1, D), lambda b_, j: (0, 0)),      # resident
                pl.BlockSpec((TN, D), lambda b_, j: (j, 0)),
            ],
            out_specs=pl.BlockSpec((1, TN, D), lambda b_, j: (b_, j, 0))),
        compiler_params=_cparams(2),
    )(patches, w, b.reshape(1, D), pos)


def ln_linear_pallas(x2, g, b_ln, w, b):
    """LayerNorm fused into a linear:  LN(x) @ w + b.  Tokens tiled, weights resident."""
    M, D_in = x2.shape
    D_out = w.shape[1]
    TM, nblk = _row_tiling(M)
    return pl.pallas_call(
        _ln_linear_kernel,
        out_shape=jax.ShapeDtypeStruct((M, D_out), x2.dtype),
        grid_spec=pltpu.PrefetchScalarGridSpec(
            num_scalar_prefetch=0,
            grid=(nblk,),
            in_specs=[
                pl.BlockSpec((TM, D_in), lambda i: (i, 0)),
                pl.BlockSpec((1, D_in), lambda i: (0, 0)),
                pl.BlockSpec((1, D_in), lambda i: (0, 0)),
                pl.BlockSpec((D_in, D_out), lambda i: (0, 0)),   # resident
                pl.BlockSpec((1, D_out), lambda i: (0, 0)),      # resident
            ],
            out_specs=pl.BlockSpec((TM, D_out), lambda i: (i, 0))),
        compiler_params=_cparams(1),
    )(x2, g.reshape(1, D_in), b_ln.reshape(1, D_in), w, b.reshape(1, D_out))


def linear_residual_pallas(x2, w, b, residual):
    """x @ w + b + residual."""
    M, D_in = x2.shape
    D_out = w.shape[1]
    TM, nblk = _row_tiling(M)
    return pl.pallas_call(
        _linear_residual_kernel,
        out_shape=jax.ShapeDtypeStruct((M, D_out), x2.dtype),
        grid_spec=pltpu.PrefetchScalarGridSpec(
            num_scalar_prefetch=0,
            grid=(nblk,),
            in_specs=[
                pl.BlockSpec((TM, D_in), lambda i: (i, 0)),
                pl.BlockSpec((D_in, D_out), lambda i: (0, 0)),   # resident
                pl.BlockSpec((1, D_out), lambda i: (0, 0)),      # resident
                pl.BlockSpec((TM, D_out), lambda i: (i, 0)),
            ],
            out_specs=pl.BlockSpec((TM, D_out), lambda i: (i, 0))),
        compiler_params=_cparams(1),
    )(x2, w, b.reshape(1, D_out), residual)


def ln_mlp_pallas(x2, g, b_ln, w1, b1, w2, b2):
    """Fused LN2 + MLP + residual:  x + fc2(GELU(fc1(LN(x))))."""
    # TODO(synk): for embed_dim >= 1024 on 64-MiB-VMEM parts, tile the hidden
    #             dim (K-grid over H with an fp32 accumulator) instead of
    #             keeping both MLP weights fully resident.
    M, D = x2.shape
    H = w1.shape[1]
    TM, nblk = _row_tiling(M)
    return pl.pallas_call(
        _ln_mlp_kernel,
        out_shape=jax.ShapeDtypeStruct((M, D), x2.dtype),
        grid_spec=pltpu.PrefetchScalarGridSpec(
            num_scalar_prefetch=0,
            grid=(nblk,),
            in_specs=[
                pl.BlockSpec((TM, D), lambda i: (i, 0)),
                pl.BlockSpec((1, D), lambda i: (0, 0)),
                pl.BlockSpec((1, D), lambda i: (0, 0)),
                pl.BlockSpec((D, H), lambda i: (0, 0)),          # resident w1
                pl.BlockSpec((1, H), lambda i: (0, 0)),
                pl.BlockSpec((H, D), lambda i: (0, 0)),          # resident w2
                pl.BlockSpec((1, D), lambda i: (0, 0)),
            ],
            out_specs=pl.BlockSpec((TM, D), lambda i: (i, 0))),
        compiler_params=_cparams(1),
    )(x2, g.reshape(1, D), b_ln.reshape(1, D), w1, b1.reshape(1, H),
      w2, b2.reshape(1, D))


def layernorm_pallas(x2, g, b):
    M, D = x2.shape
    TM, nblk = _row_tiling(M)
    return pl.pallas_call(
        _layernorm_kernel,
        out_shape=jax.ShapeDtypeStruct((M, D), x2.dtype),
        grid_spec=pltpu.PrefetchScalarGridSpec(
            num_scalar_prefetch=0,
            grid=(nblk,),
            in_specs=[pl.BlockSpec((TM, D), lambda i: (i, 0)),
                      pl.BlockSpec((1, D), lambda i: (0, 0)),
                      pl.BlockSpec((1, D), lambda i: (0, 0))],
            out_specs=pl.BlockSpec((TM, D), lambda i: (i, 0))),
        compiler_params=_cparams(1),
    )(x2, g.reshape(1, D), b.reshape(1, D))


def attention_pallas(qkv3, num_heads, scale):
    """qkv3: (B, N, 3D) packed QKV -> (B, N, D) attention output (token-major)."""
    B, N, threeD = qkv3.shape
    D = threeD // 3
    hd = D // num_heads
    kernel = _make_attention_kernel(num_heads, hd, float(scale))
    return pl.pallas_call(
        kernel,
        out_shape=jax.ShapeDtypeStruct((B, N, D), qkv3.dtype),
        grid_spec=pltpu.PrefetchScalarGridSpec(
            num_scalar_prefetch=0,
            grid=(B,),
            in_specs=[pl.BlockSpec((1, N, threeD), lambda b_: (b_, 0, 0))],
            out_specs=pl.BlockSpec((1, N, D), lambda b_: (b_, 0, 0))),
        compiler_params=_cparams(1),
    )(qkv3)


# ----------------------------------------------------------------------------
# Sin-cos positional embedding (verbatim from the PyTorch spec, numpy)
# ----------------------------------------------------------------------------
def get_1d_sincos_pos_embed_from_grid(embed_dim, pos):
    assert embed_dim % 2 == 0
    omega = np.arange(embed_dim // 2, dtype=float)
    omega /= embed_dim / 2.0
    omega = 1.0 / 10000 ** omega
    pos = pos.reshape(-1)
    out = np.einsum("m,d->md", pos, omega)
    emb_sin = np.sin(out)
    emb_cos = np.cos(out)
    return np.concatenate([emb_sin, emb_cos], axis=1)


def get_2d_sincos_pos_embed_from_grid(embed_dim, grid):
    assert embed_dim % 2 == 0
    emb_h = get_1d_sincos_pos_embed_from_grid(embed_dim // 2, grid[0])
    emb_w = get_1d_sincos_pos_embed_from_grid(embed_dim // 2, grid[1])
    return np.concatenate([emb_h, emb_w], axis=1)


def get_2d_sincos_pos_embed(embed_dim, grid_size, cls_token=False):
    grid_h = np.arange(grid_size, dtype=float)
    grid_w = np.arange(grid_size, dtype=float)
    grid = np.meshgrid(grid_w, grid_h)
    grid = np.stack(grid, axis=0)
    grid = grid.reshape([2, 1, grid_size, grid_size])
    pos_embed = get_2d_sincos_pos_embed_from_grid(embed_dim, grid)
    if cls_token:
        pos_embed = np.concatenate([np.zeros([1, embed_dim]), pos_embed], axis=0)
    return pos_embed


# ----------------------------------------------------------------------------
# Parameter construction (deterministic, torch.nn.Linear-style uniform init)
# ----------------------------------------------------------------------------
def _init_linear(key, fan_in, fan_out, dtype):
    kw, kb = jax.random.split(key)
    bound = 1.0 / math.sqrt(fan_in)
    w = jax.random.uniform(kw, (fan_in, fan_out), jnp.float32, -bound, bound)
    b = jax.random.uniform(kb, (fan_out,), jnp.float32, -bound, bound)
    return w.astype(dtype), b.astype(dtype)


def make_vit_params(key, *, img_size, patch_size, in_chans, embed_dim, depth,
                    num_heads, mlp_ratio, dtype=jnp.float32):
    del num_heads  # head split is shape-only
    n_side = img_size // patch_size
    num_patches = n_side * n_side
    hidden = int(embed_dim * mlp_ratio)
    patch_dim = in_chans * patch_size * patch_size

    keys = jax.random.split(key, depth + 1)
    patch_w, patch_b = _init_linear(keys[0], patch_dim, embed_dim, dtype)
    pos = get_2d_sincos_pos_embed(embed_dim, n_side, cls_token=False)

    params = {
        "patch_w": patch_w,
        "patch_b": patch_b,
        "pos_embed": jnp.asarray(pos, dtype)[None],              # (1, N, D)
        "norm_g": jnp.ones((embed_dim,), dtype),
        "norm_b": jnp.zeros((embed_dim,), dtype),
        "blocks": [],
    }
    for i in range(depth):
        k1, k2, k3, k4 = jax.random.split(keys[i + 1], 4)
        qkv_w, qkv_b = _init_linear(k1, embed_dim, 3 * embed_dim, dtype)
        proj_w, proj_b = _init_linear(k2, embed_dim, embed_dim, dtype)
        fc1_w, fc1_b = _init_linear(k3, embed_dim, hidden, dtype)
        fc2_w, fc2_b = _init_linear(k4, hidden, embed_dim, dtype)
        params["blocks"].append({
            "ln1_g": jnp.ones((embed_dim,), dtype),
            "ln1_b": jnp.zeros((embed_dim,), dtype),
            "qkv_w": qkv_w, "qkv_b": qkv_b,
            "proj_w": proj_w, "proj_b": proj_b,
            "ln2_g": jnp.ones((embed_dim,), dtype),
            "ln2_b": jnp.zeros((embed_dim,), dtype),
            "fc1_w": fc1_w, "fc1_b": fc1_b,
            "fc2_w": fc2_w, "fc2_b": fc2_b,
        })
    return params, num_patches


# ----------------------------------------------------------------------------
# Full forward pass (Pallas) and pure-JAX reference
# ----------------------------------------------------------------------------
def _patchify(x_img, patch):
    B, C, H, W = x_img.shape
    nH, nW = H // patch, W // patch
    p = x_img.reshape(B, C, nH, patch, nW, patch)
    p = p.transpose(0, 2, 4, 1, 3, 5)                  # (B, nH, nW, C, p, p)
    return p.reshape(B, nH * nW, C * patch * patch), nH, nW


def vit_forward_pallas(x_img, params, *, patch_size, num_heads):
    B = x_img.shape[0]
    patches, nH, nW = _patchify(x_img, patch_size)
    N = nH * nW
    D = params["patch_w"].shape[1]
    M = B * N
    hd = D // num_heads
    scale = hd ** -0.5

    # Patch embedding (Conv2d kernel=stride=patch as a matmul) with the sincos
    # pos-embed add fused in-kernel.
    x3 = patch_embed_pallas(patches, params["patch_w"], params["patch_b"],
                            params["pos_embed"][0])
    x = x3.reshape(M, D)                               # residual stream (M, D)

    for blk in params["blocks"]:
        # --- attention branch: LN1 fused into QKV projection ---
        qkv = ln_linear_pallas(x, blk["ln1_g"], blk["ln1_b"],
                               blk["qkv_w"], blk["qkv_b"])          # (M, 3D)
        attn_out = attention_pallas(qkv.reshape(B, N, 3 * D), num_heads, scale)
        x = linear_residual_pallas(attn_out.reshape(M, D),
                                   blk["proj_w"], blk["proj_b"], x)
        # --- MLP branch: LN2 + fc1 + GELU + fc2 + residual, all fused ---
        x = ln_mlp_pallas(x, blk["ln2_g"], blk["ln2_b"],
                          blk["fc1_w"], blk["fc1_b"],
                          blk["fc2_w"], blk["fc2_b"])

    x = layernorm_pallas(x, params["norm_g"], params["norm_b"])
    x = x.reshape(B, N, D)
    pooled = x.mean(axis=1)
    spatial = x.reshape(B, nH, nW, D)
    return pooled, None, spatial


def vit_reference(x_img, params, *, patch_size, num_heads):
    B = x_img.shape[0]
    patches, nH, nW = _patchify(x_img, patch_size)
    N = nH * nW
    D = params["patch_w"].shape[1]
    hd = D // num_heads
    scale = hd ** -0.5

    x = patches @ params["patch_w"] + params["patch_b"] + params["pos_embed"]
    for blk in params["blocks"]:
        h = _layernorm_math(x, blk["ln1_g"], blk["ln1_b"])
        qkv = h @ blk["qkv_w"] + blk["qkv_b"]
        qkv = qkv.reshape(B, N, 3, num_heads, hd).transpose(2, 0, 3, 1, 4)
        q, k, v = qkv[0], qkv[1], qkv[2]
        s = jnp.einsum("bhqd,bhkd->bhqk", q, k) * scale
        a = jax.nn.softmax(s, axis=-1)
        o = jnp.einsum("bhqk,bhkd->bhqd", a, v)
        o = o.transpose(0, 2, 1, 3).reshape(B, N, D)
        x = x + (o @ blk["proj_w"] + blk["proj_b"])
        h = _layernorm_math(x, blk["ln2_g"], blk["ln2_b"])
        h = _gelu_exact(h @ blk["fc1_w"] + blk["fc1_b"])
        x = x + (h @ blk["fc2_w"] + blk["fc2_b"])
    x = _layernorm_math(x, params["norm_g"], params["norm_b"])
    return x.mean(axis=1), None, x.reshape(B, nH, nW, D)


# ----------------------------------------------------------------------------
if __name__ == "__main__":
    # Small but lane-friendly config: 32x32 image, 8x8 patches -> 16 tokens,
    # embed_dim=128, 2 blocks, 4 heads, mlp_ratio=4.
    B, C = 2, 3
    IMG, PATCH = 32, 8
    EMBED, DEPTH, HEADS = 128, 2, 4
    MLP_RATIO = 4.0

    key = jax.random.PRNGKey(0)
    kx, kp = jax.random.split(key)
    x_img = jax.random.normal(kx, (B, C, IMG, IMG), jnp.float32)
    params, num_patches = make_vit_params(
        kp, img_size=IMG, patch_size=PATCH, in_chans=C, embed_dim=EMBED,
        depth=DEPTH, num_heads=HEADS, mlp_ratio=MLP_RATIO)

    pooled, _, spatial = vit_forward_pallas(
        x_img, params, patch_size=PATCH, num_heads=HEADS)
    pooled = jax.block_until_ready(pooled)
    spatial = jax.block_until_ready(spatial)

    ref_pooled, _, ref_spatial = vit_reference(
        x_img, params, patch_size=PATCH, num_heads=HEADS)

    assert pooled.shape == (B, EMBED)
    assert spatial.shape == (B, IMG // PATCH, IMG // PATCH, EMBED)
    assert jnp.allclose(pooled, ref_pooled, atol=2e-3, rtol=2e-3), "pooled mismatch"
    assert jnp.allclose(spatial, ref_spatial, atol=2e-3, rtol=2e-3), "spatial mismatch"

    print("KERNEL_OK")
</pallas_src>

<mosaic_0001>
module attributes {stable_mosaic.version = 11 : i64} {
  func.func @_patch_embed_kernel(%arg0: i32, %arg1: i32, %arg2: memref<1x16x192xf32, #tpu.memory_space<vmem>>, %arg3: memref<192x128xf32, #tpu.memory_space<vmem>>, %arg4: memref<1x128xf32, #tpu.memory_space<vmem>>, %arg5: memref<16x128xf32, #tpu.memory_space<vmem>>, %arg6: memref<1x16x128xf32, #tpu.memory_space<vmem>>) attributes {dimension_semantics = [#tpu.dimension_semantics<parallel>, #tpu.dimension_semantics<parallel>], iteration_bounds = array<i64: 2, 1>, scalar_prefetch = 0 : i64, scratch_operands = 0 : i64, tpu.core_type = #tpu.core_type<tc>, window_params = [{transform_indices = @transform_0, window_bounds = array<i64: 1, 16, 192>}, {pipeline_mode = #tpu.pipeline_mode<synchronous>, transform_indices = @transform_1, window_bounds = array<i64: 192, 128>}, {pipeline_mode = #tpu.pipeline_mode<synchronous>, transform_indices = @transform_2, window_bounds = array<i64: 1, 128>}, {transform_indices = @transform_3, window_bounds = array<i64: 16, 128>}, {transform_indices = @transform_4, window_bounds = array<i64: 1, 16, 128>}]} {
    %c0 = arith.constant 0 : index
    %c0_0 = arith.constant 0 : index
    %c0_1 = arith.constant 0 : index
    %0 = vector.load %arg2[%c0, %c0_0, %c0_1] : memref<1x16x192xf32, #tpu.memory_space<vmem>>, vector<1x16x192xf32>
    %1 = vector.shape_cast %0 : vector<1x16x192xf32> to vector<16x192xf32>
    %c0_2 = arith.constant 0 : index
    %c0_3 = arith.constant 0 : index
    %2 = vector.load %arg3[%c0_2, %c0_3] : memref<192x128xf32, #tpu.memory_space<vmem>>, vector<192x128xf32>
    %cst = arith.constant dense<0.000000e+00> : vector<16x128xf32>
    %3 = tpu.matmul %1, %2, %cst {dimension_numbers = #tpu.dot_dimension_numbers<[1], [0], [0], [1], [0, 0, 1, 1], [], []>} : vector<16x192xf32>, vector<192x128xf32>, vector<16x128xf32> -> vector<16x128xf32>
    %c0_4 = arith.constant 0 : index
    %c0_5 = arith.constant 0 : index
    %4 = vector.load %arg4[%c0_4, %c0_5] : memref<1x128xf32, #tpu.memory_space<vmem>>, vector<1x128xf32>
    %5 = vector.broadcast %4 : vector<1x128xf32> to vector<16x128xf32>
    %6 = arith.addf %3, %5 : vector<16x128xf32>
    %c0_6 = arith.constant 0 : index
    %c0_7 = arith.constant 0 : index
    %7 = vector.load %arg5[%c0_6, %c0_7] : memref<16x128xf32, #tpu.memory_space<vmem>>, vector<16x128xf32>
    %8 = arith.addf %6, %7 : vector<16x128xf32>
    %c0_8 = arith.constant 0 : index
    %c0_9 = arith.constant 0 : index
    %c0_10 = arith.constant 0 : index
    %9 = vector.load %arg6[%c0_8, %c0_9, %c0_10] : memref<1x16x128xf32, #tpu.memory_space<vmem>>, vector<1x16x128xf32>
    %10 = vector.shape_cast %9 : vector<1x16x128xf32> to vector<16x128xf32>
    %11 = vector.shape_cast %8 : vector<16x128xf32> to vector<1x16x128xf32>
    tpu.vector_store %arg6[%c0_8, %c0_9, %c0_10], %11 {strides = array<i32>} : memref<1x16x128xf32, #tpu.memory_space<vmem>>, vector<1x16x128xf32>,
    return
  }
  func.func @transform_0(%arg0: i32, %arg1: i32) -> (i32, i32, i32) {
    %c0_i32 = arith.constant 0 : i32
    %c0_i32_0 = arith.constant 0 : i32
    return %arg0, %arg1, %c0_i32 : i32, i32, i32
  }
  func.func @transform_1(%arg0: i32, %arg1: i32) -> (i32, i32) {
    %c0_i32 = arith.constant 0 : i32
    %c0_i32_0 = arith.constant 0 : i32
    %c0_i32_1 = arith.constant 0 : i32
    return %c0_i32, %c0_i32_0 : i32, i32
  }
  func.func @transform_2(%arg0: i32, %arg1: i32) -> (i32, i32) {
    %c0_i32 = arith.constant 0 : i32
    %c0_i32_0 = arith.constant 0 : i32
    %c0_i32_1 = arith.constant 0 : i32
    return %c0_i32, %c0_i32_0 : i32, i32
  }
  func.func @transform_3(%arg0: i32, %arg1: i32) -> (i32, i32) {
    %c0_i32 = arith.constant 0 : i32
    %c0_i32_0 = arith.constant 0 : i32
    return %arg1, %c0_i32 : i32, i32
  }
  func.func @transform_4(%arg0: i32, %arg1: i32) -> (i32, i32, i32) {
    %c0_i32 = arith.constant 0 : i32
    %c0_i32_0 = arith.constant 0 : i32
    return %arg0, %arg1, %c0_i32 : i32, i32, i32
  }
}

</mosaic_0001>

<llo_original>
// kernel: tpu_custom_call.1
$region0: #{tpu_custom_call.1}
  #allocation0 [shape = 'u32[]', space=smem, size = 0x4, offset = 0x4, fixed_abs, tag = 'smem constant byte address 0x4 - core index']
  #allocation1 [shape = 'u32[144,128]{1,0:T(1,128)}', space=vmem, size = 0x12000, scoped, tag = 'internal scratch']
  %s0 = inlined_call_operand.hbm [shape: f32[2,16,192], index: 0, kind: input, shape index: {}]
  %s1 = inlined_call_operand.hbm [shape: f32[192,128], index: 1, kind: input, shape index: {}]
  %s2 = inlined_call_operand.vmem [shape: f32[1,128], index: 2, kind: input, shape index: {}]
  %s3 = inlined_call_operand.hbm [shape: f32[16,128], index: 3, kind: input, shape index: {}]
  %s4 = inlined_call_operand.hbm [shape: f32[2,16,128], index: 4, kind: output, shape index: {}]
  %s5 = sld [smem:[#allocation0]]
  $region61: #{tpu_custom_call.1} parent=0
    _
  %s7 = ssub.s32 1, %s5
  %s8 = scalar_select 0, %s7, %s5
  $region1: #{tpu_custom_call.1} parent=0
    #allocation2 [shape = 'u8[32768]{0}', space=vmem, size = 0x8000, scoped, tag = 'input window, operand 0']
    #allocation3 [shape = 's32[2]{0}', space=sflag, size = 0x8, scoped, tag = 'scoped memory for tpu_custom_call.1']
    #allocation4 [shape = 's32[2]{0}', space=sflag, size = 0x8, scoped, tag = 'scoped memory for tpu_custom_call.1']
    #allocation5 [shape = 'u8[98304]{0}', space=vmem, size = 0x18000, scoped, tag = 'input window, operand 1, single buffered']
    #allocation6 [shape = 's32[1]{0}', space=sflag, size = 0x4, scoped, tag = 'scoped memory for tpu_custom_call.1']
    #allocation7 [shape = 'u8[8192]{0}', space=vmem, size = 0x2000, scoped, tag = 'input window, operand 3, single buffered']
    #allocation8 [shape = 'u8[16384]{0}', space=vmem, size = 0x4000, scoped, tag = 'output window, operand 0']
    %9 = vsyncpa [#allocation3], 0
    %s10 = scalar_lea.sflag [#allocation3], 1
    %11 = vsyncpa %s10, 0
    %12 = vsyncpa [#allocation6], 0
    %13 = vsyncpa [#allocation4], 0
    %s14 = scalar_lea.sflag [#allocation4], 1
    %15 = vsyncpa %s14, 0
    loop: start=0, step=1, limit=4
    $region2: #{tpu_custom_call.1} parent=1 // loop_pre_header
      _
    $region3: #{tpu_custom_call.1} parent=1 // loop_header
      %s17 = sphi 0, %s21
      %p18 = scmp.ge.s32.totalorder %s17, 4
      %s24 = sphi 0, %s36
      %s25 = sphi 0, %s32
      %s26 = sphi 0, %s24
      %s27 = sphi 0, %s25
      %s28 = sphi 0, %s26
      %s29 = sphi 0, %s27
      %s41 = sphi 0, %s43
      %s44 = sphi 0, %s41
      %s45 = sphi 0, %s44
      %s61 = sphi 0, %s45
      %s65 = sphi 0, %s65
      %s67 = sphi 0, %s65
      %s68 = sphi 0, %s67
      %s82 = sphi 0, %s68
      %s86 = sphi 0, %s86
      %s88 = sphi 0, %s86
      %s89 = sphi 0, %s88
      %s103 = sphi 0, %s89
      %s109 = sphi 0, %s111
      %s112 = sphi 0, %s109
      %s113 = sphi 0, %s112
      %s129 = sphi 0, %s113
      %s137 = sphi 0, %s139
      %s140 = sphi 0, %s137
      %s141 = sphi 0, %s140
      %s157 = sphi 0, %s141
    $region4: #{tpu_custom_call.1} parent=1 // loop_header_branch
      %20 = sbr.rel (%p18) target = $region8
    $region5: #{tpu_custom_call.1} parent=1 // loop_body
      %s22 = ssub.s32 %s17, 1
      %s23 = ssub.s32 %s17, 2
      %s30 = sadd.s32 1, %s25
      %p31 = scmp.ge.s32.totalorder %s30, 1
      %s32 = scalar_select %p31, 0, %s30
      %s33 = sadd.s32 1, %s24
      %s34 = scalar_select %p31, %s33, %s24
      %p35 = scmp.ge.s32.totalorder %s34, 2
      %s36 = scalar_select %p35, 0, %s34
      %s37 = ssub.s32 %s24, %s36
      %s38 = ssub.s32 %s25, %s32
      %s39 = sor.u32 %s37, %s38
      %p40 = scmp.eq.s32.totalorder %s39, 0
      %s42 = sadd.s32 %s41, 1
      %s43 = scalar_select %p40, %s41, %s42
      %p46 = pneg %p40
      %p47 = scmp.eq.s32.totalorder %s17, 1
      %p48 = por %p46, %p47
      %p49 = scmp.ne.s32.totalorder %s41, %s44
      %p50 = scmp.eq.s32.totalorder %s17, 0
      %p51 = por %p49, %p50
      %p52 = scmp.ne.s32.totalorder %s41, %s44
      %p53 = scmp.eq.s32.totalorder %s22, 1
      %p54 = por %p52, %p53
      %p55 = scmp.ne.s32.totalorder %s44, %s45
      %p56 = scmp.eq.s32.totalorder %s22, 0
      %p57 = por %p55, %p56
      %p58 = scmp.ne.s32.totalorder %s44, %s45
      %p59 = scmp.eq.s32.totalorder %s23, 1
      %p60 = por %p58, %p59
      %p62 = scmp.ne.s32.totalorder %s45, %s61
      %p63 = scmp.eq.s32.totalorder %s23, 0
      %p64 = por %p62, %p63
      %s66 = sadd.s32 %s65, 1
      %p69 = scmp.eq.s32.totalorder %s17, 1
      %p70 = scmp.ne.s32.totalorder %s65, %s67
      %p71 = scmp.eq.s32.totalorder %s17, 0
      %p72 = por %p70, %p71
      %p73 = scmp.ne.s32.totalorder %s65, %s67
      %p74 = scmp.eq.s32.totalorder %s22, 1
      %p75 = por %p73, %p74
      %p76 = scmp.ne.s32.totalorder %s67, %s68
      %p77 = scmp.eq.s32.totalorder %s22, 0
      %p78 = por %p76, %p77
      %p79 = scmp.ne.s32.totalorder %s67, %s68
      %p80 = scmp.eq.s32.totalorder %s23, 1
      %p81 = por %p79, %p80
      %p83 = scmp.ne.s32.totalorder %s68, %s82
      %p84 = scmp.eq.s32.totalorder %s23, 0
      %p85 = por %p83, %p84
      %s87 = sadd.s32 %s86, 1
      %p90 = scmp.eq.s32.totalorder %s17, 1
      %p91 = scmp.ne.s32.totalorder %s86, %s88
      %p92 = scmp.eq.s32.totalorder %s17, 0
      %p93 = por %p91, %p92
      %p94 = scmp.ne.s32.totalorder %s86, %s88
      %p95 = scmp.eq.s32.totalorder %s22, 1
      %p96 = por %p94, %p95
      %p97 = scmp.ne.s32.totalorder %s88, %s89
      %p98 = scmp.eq.s32.totalorder %s22, 0
      %p99 = por %p97, %p98
      %p100 = scmp.ne.s32.totalorder %s88, %s89
      %p101 = scmp.eq.s32.totalorder %s23, 1
      %p102 = por %p100, %p101
      %p104 = scmp.ne.s32.totalorder %s89, %s103
      %p105 = scmp.eq.s32.totalorder %s23, 0
      %p106 = por %p104, %p105
      %s107 = ssub.s32 %s25, %s32
      %p108 = scmp.eq.s32.totalorder %s107, 0
      %s110 = sadd.s32 %s109, 1
      %s111 = scalar_select %p108, %s109, %s110
      %p114 = pneg %p108
      %p115 = scmp.eq.s32.totalorder %s17, 1
      %p116 = por %p114, %p115
      %p117 = scmp.ne.s32.totalorder %s109, %s112
      %p118 = scmp.eq.s32.totalorder %s17, 0
      %p119 = por %p117, %p118
      %p120 = scmp.ne.s32.totalorder %s109, %s112
      %p121 = scmp.eq.s32.totalorder %s22, 1
      %p122 = por %p120, %p121
      %p123 = scmp.ne.s32.totalorder %s112, %s113
      %p124 = scmp.eq.s32.totalorder %s22, 0
      %p125 = por %p123, %p124
      %p126 = scmp.ne.s32.totalorder %s112, %s113
      %p127 = scmp.eq.s32.totalorder %s23, 1
      %p128 = por %p126, %p127
      %p130 = scmp.ne.s32.totalorder %s113, %s129
      %p131 = scmp.eq.s32.totalorder %s23, 0
      %p132 = por %p130, %p131
      %s133 = ssub.s32 %s24, %s36
      %s134 = ssub.s32 %s25, %s32
      %s135 = sor.u32 %s133, %s134
      %p136 = scmp.eq.s32.totalorder %s135, 0
      %s138 = sadd.s32 %s137, 1
      %s139 = scalar_select %p136, %s137, %s138
      %p142 = pneg %p136
      %p143 = scmp.eq.s32.totalorder %s17, 1
      %p144 = por %p142, %p143
      %p145 = scmp.ne.s32.totalorder %s137, %s140
      %p146 = scmp.eq.s32.totalorder %s17, 0
      %p147 = por %p145, %p146
      %p148 = scmp.ne.s32.totalorder %s137, %s140
      %p149 = scmp.eq.s32.totalorder %s22, 1
      %p150 = por %p148, %p149
      %p151 = scmp.ne.s32.totalorder %s140, %s141
      %p152 = scmp.eq.s32.totalorder %s22, 0
      %p153 = por %p151, %p152
      %p154 = scmp.ne.s32.totalorder %s140, %s141
      %p155 = scmp.eq.s32.totalorder %s23, 1
      %p156 = por %p154, %p155
      %p158 = scmp.ne.s32.totalorder %s141, %s157
      %p159 = scmp.eq.s32.totalorder %s23, 0
      %p160 = por %p158, %p159
      %p161 = scmp.le.s32.totalorder 1, %s17
      %p162 = scmp.lt.s32.totalorder %s17, 3
      %p163 = pnand %p161, %p162
      %p164 = pneg %p163
      // Predicated region
      $region9: #{tpu_custom_call.1} parent=5 // pred_check
        _
      $region10: #{tpu_custom_call.1} parent=5 // pred_check_branch
        %166 = sbr.rel (%p163) target = $region12
      $region11: #{tpu_custom_call.1} parent=5 // pred_region
        %s167 = ssub.s32 %s17, 1
        // Predicated region
        $region13: #{tpu_custom_call.1} parent=11 // pred_check
          %p168 = pneg %p78
        $region14: #{tpu_custom_call.1} parent=11 // pred_check_branch
          %170 = sbr.rel (%p168) target = $region16
        $region15: #{tpu_custom_call.1} parent=11 // pred_region
          %s172 = ssub.s32 3072, 3072
          %173 = vsyncadd [#allocation6], %s172
          %s174 = sshll.u32 [#allocation5], 4
          %s175 = int_to_ptr.vmem [resolvable:$true] %s174
          %180 = dma.hbm_to_vmem [thread:$0]  %s1, 3072, %s175, [#allocation6], 128, 128, 8
        $region16: #{tpu_custom_call.1} parent=11 // pred_fallthru
          _
        // Predicated region
        $region17: #{tpu_custom_call.1} parent=11 // pred_check
          %p181 = pneg %p99
        $region18: #{tpu_custom_call.1} parent=11 // pred_check_branch
          %183 = sbr.rel (%p181) target = $region20
        $region19: #{tpu_custom_call.1} parent=11 // pred_region
          _
        $region20: #{tpu_custom_call.1} parent=11 // pred_fallthru
          _
        // Predicated region
        $region21: #{tpu_custom_call.1} parent=11 // pred_check
          %p184 = pneg %p125
        $region22: #{tpu_custom_call.1} parent=11 // pred_check_branch
          %186 = sbr.rel (%p184) target = $region24
        $region23: #{tpu_custom_call.1} parent=11 // pred_region
          %s187 = smul.u32 2, %s27
          %s189 = ssub.s32 256, 256
          %190 = vsyncadd [#allocation6], %s189
          %s191 = smul.addr %s187, 128
          %s192 = scalar_lea.hbm %s3, %s191
          %s193 = sshll.u32 [#allocation7], 4
          %s194 = int_to_ptr.vmem [resolvable:$true] %s193
          %199 = dma.hbm_to_vmem [thread:$0]  %s192, 256, %s194, [#allocation6], 128, 128, 8
        $region24: #{tpu_custom_call.1} parent=11 // pred_fallthru
          _
      $region12: #{tpu_custom_call.1} parent=5 // pred_fallthru
        _
      %p200 = scmp.lt.s32.totalorder %s17, 2
      // Predicated region
      $region25: #{tpu_custom_call.1} parent=5 // pred_check
        %p201 = pneg %p200
      $region26: #{tpu_custom_call.1} parent=5 // pred_check_branch
        %203 = sbr.rel (%p201) target = $region28
      $region27: #{tpu_custom_call.1} parent=5 // pred_region
        // Predicated region
        $region29: #{tpu_custom_call.1} parent=27 // pred_check
          %p204 = pneg %p51
        $region30: #{tpu_custom_call.1} parent=27 // pred_check_branch
          %206 = sbr.rel (%p204) target = $region32
        $region31: #{tpu_custom_call.1} parent=27 // pred_region
          %s207 = sand.u32 %s41, 1
          %s208 = scalar_lea.sflag [#allocation3], %s207
          %s209 = sand.u32 %s41, 1
          %s210 = smul.addr %s209, 32
          %s211 = scalar_lea.vmem [#allocation2], %s210
          %s212 = smul.u32 2, %s25
          %s214 = ssub.s32 512, 512
          %215 = vsyncadd %s208, %s214
          %s216 = smul.addr %s212, 2
          %s217 = smul.addr %s24, 4
          %s218 = sadd.s32 %s216, %s217
          %s219 = smul.addr %s218, 128
          %s220 = scalar_lea.hbm %s0, %s219
          %s221 = sshll.u32 %s211, 4
          %s222 = int_to_ptr.vmem [resolvable:$true] %s221
          %227 = dma.hbm_to_vmem [thread:$0]  %s220, 512, %s222, %s208, 256, 256, 16
        $region32: #{tpu_custom_call.1} parent=27 // pred_fallthru
          _
      $region28: #{tpu_custom_call.1} parent=5 // pred_fallthru
        _
      %p228 = scmp.le.s32.totalorder 1, %s17
      %p229 = scmp.lt.s32.totalorder %s17, 3
      %p230 = pnand %p228, %p229
      %p231 = pneg %p230
      // Predicated region
      $region33: #{tpu_custom_call.1} parent=5 // pred_check
        _
      $region34: #{tpu_custom_call.1} parent=5 // pred_check_branch
        %233 = sbr.rel (%p230) target = $region36
      $region35: #{tpu_custom_call.1} parent=5 // pred_region
        %s234 = ssub.s32 %s17, 1
        %s235 = sand.u32 %s44, 1
        %s236 = scalar_lea.sflag [#allocation3], %s235
        %s237 = sand.u32 %s44, 1
        %s238 = smul.addr %s237, 32
        %s239 = scalar_lea.vmem [#allocation2], %s238
        // Predicated region
        $region37: #{tpu_custom_call.1} parent=35 // pred_check
          %p240 = pneg %p57
        $region38: #{tpu_custom_call.1} parent=35 // pred_check_branch
          %242 = sbr.rel (%p240) target = $region40
        $region39: #{tpu_custom_call.1} parent=35 // pred_region
          %243 = dma.done %s236, 512
        $region40: #{tpu_custom_call.1} parent=35 // pred_fallthru
          _
        // Predicated region
        $region41: #{tpu_custom_call.1} parent=35 // pred_check
          %p244 = pneg %p78
        $region42: #{tpu_custom_call.1} parent=35 // pred_check_branch
          %246 = sbr.rel (%p244) target = $region44
        $region43: #{tpu_custom_call.1} parent=35 // pred_region
          %247 = dma.done [#allocation6], 3072
        $region44: #{tpu_custom_call.1} parent=35 // pred_fallthru
          _
        // Predicated region
        $region45: #{tpu_custom_call.1} parent=35 // pred_check
          %p248 = pneg %p125
        $region46: #{tpu_custom_call.1} parent=35 // pred_check_branch
          %250 = sbr.rel (%p248) target = $region48
        $region47: #{tpu_custom_call.1} parent=35 // pred_region
          %251 = dma.done [#allocation6], 256
        $region48: #{tpu_custom_call.1} parent=35 // pred_fallthru
          _
        %s252 = sand.u32 %s44, 1
        %s253 = scalar_lea.sflag [#allocation3], %s252
        %s254 = sand.u32 %s44, 1
        %s255 = smul.addr %s254, 32
        %s256 = scalar_lea.vmem [#allocation2], %s255
        %p257 = pneg %p57
        %p258 = pneg %p54
        %p259 = pneg %p78
        %p260 = pneg %p75
        %p261 = pneg %p99
        %p262 = pneg %p96
        %p263 = pneg %p125
        %p264 = pneg %p122
        %p265 = pneg %p153
        %p266 = pneg %p150
        %s267 = sand.u32 %s140, 1
        %s268 = scalar_lea.sflag [#allocation4], %s267
        %s269 = sand.u32 %s140, 1
        %s270 = smul.addr %s269, 16
        %s271 = scalar_lea.vmem [#allocation8], %s270
        %s272 = smul.u32 2, %s27
        %s273 = smul.u32 2, %s27
        %s274 = smul.u32 2, %s27
        %v275 = vld [vmem:[%s239] sm:$0xff]
        %v276 = vld [vmem:[%s239 + $0x8] sm:$0xff]
        %v277 = vld [vmem:[%s239 + $0x10] sm:$0xff]
        %v278 = vld [vmem:[%s239 + $0x18] sm:$0xff]
        %v279 = vld [vmem:[#allocation5] sm:$0xff]
        %v280 = vld [vmem:[#allocation5 + $0x8] sm:$0xff]
        %v281 = vld [vmem:[#allocation5 + $0x10] sm:$0xff]
        %v282 = vld [vmem:[#allocation5 + $0x18] sm:$0xff]
        %v283 = vld [vmem:[#allocation5 + $0x20] sm:$0xff]
        %v284 = vld [vmem:[#allocation5 + $0x28] sm:$0xff]
        %v285 = vld [vmem:[#allocation5 + $0x30] sm:$0xff]
        %v286 = vld [vmem:[#allocation5 + $0x38] sm:$0xff]
        %v287 = vld [vmem:[#allocation5 + $0x40] sm:$0xff]
        %v288 = vld [vmem:[#allocation5 + $0x48] sm:$0xff]
        %v289 = vld [vmem:[#allocation5 + $0x50] sm:$0xff]
        %v290 = vld [vmem:[#allocation5 + $0x58] sm:$0xff]
        %v291 = vld [vmem:[#allocation5 + $0x60] sm:$0xff]
        %v292 = vld [vmem:[#allocation5 + $0x68] sm:$0xff]
        %v293 = vld [vmem:[#allocation5 + $0x70] sm:$0xff]
        %v294 = vld [vmem:[#allocation5 + $0x78] sm:$0xff]
        %v295 = vld [vmem:[#allocation5 + $0x80] sm:$0xff]
        %v296 = vld [vmem:[#allocation5 + $0x88] sm:$0xff]
        %v297 = vld [vmem:[#allocation5 + $0x90] sm:$0xff]
        %v298 = vld [vmem:[#allocation5 + $0x98] sm:$0xff]
        %v299 = vld [vmem:[#allocation5 + $0xa0] sm:$0xff]
        %v300 = vld [vmem:[#allocation5 + $0xa8] sm:$0xff]
        %v301 = vld [vmem:[#allocation5 + $0xb0] sm:$0xff]
        %v302 = vld [vmem:[#allocation5 + $0xb8] sm:$0xff]
        %v303 = vld [vmem:[%s2] sm:$0x1]
        %v305 = vlaneseq
        %v306 = vshrl.u32 %v305, 7
        %v307 = vsub.s32 0, %v306
        %v308 = vrot.slane %v303, %v307
        %vm310 = vcmask 523264
        %v312 = vsel %vm310, %v276, 0
        %v315 = vsel %vm310, %v278, 0
        %317 = vmatprep.subr.mxu0 0.0
        %318 = vmatpush1.msra.mxu0 %v294
        %319 = vmatprep.subr.mxu0 0.0
        %320 = vmatpush1.msra.mxu0 %v293
        %321 = vmatprep.subr.mxu0 0.0
        %322 = vmatpush1.msra.mxu0 %v292
        %323 = vmatprep.subr.mxu0 0.0
        %324 = vmatpush1.msra.mxu0 %v291
        %325 = vmatprep.subr.mxu0 0.0
        %326 = vmatpush1.msra.mxu0 %v290
        %327 = vmatprep.subr.mxu0 0.0
        %328 = vmatpush1.msra.mxu0 %v289
        %329 = vmatprep.subr.mxu0 0.0
        %330 = vmatpush1.msra.mxu0 %v288
        %331 = vmatprep.subr.mxu0 0.0
        %332 = vmatpush1.msra.mxu0 %v287
        %333 = vmatprep.subr.mxu0 0.0
        %334 = vmatpush1.msra.mxu0 %v286
        %335 = vmatprep.subr.mxu0 0.0
        %336 = vmatpush1.msra.mxu0 %v285
        %337 = vmatprep.subr.mxu0 0.0
        %338 = vmatpush1.msra.mxu0 %v284
        %339 = vmatprep.subr.mxu0 0.0
        %340 = vmatpush1.msra.mxu0 %v283
        %341 = vmatprep.subr.mxu0 0.0
        %342 = vmatpush1.msra.mxu0 %v282
        %343 = vmatprep.subr.mxu0 0.0
        %344 = vmatpush1.msra.mxu0 %v281
        %345 = vmatprep.subr.mxu0 0.0
        %346 = vmatpush1.msra.mxu0 %v280
        %347 = vmatprep.subr.mxu0 0.0
        %348 = vmatpush1.msra.mxu0 %v279
        %349 = vmatprep.subr.mxu0 0.0
        %350 = vmatpush2.msra.mxu0 0.0
        %351 = vmatprep.subr.mxu0 0.0
        %352 = vmatpush2.msra.mxu0 0.0
        %353 = vmatprep.subr.mxu0 0.0
        %354 = vmatpush2.msra.mxu0 0.0
        %355 = vmatprep.subr.mxu0 0.0
        %356 = vmatpush2.msra.mxu0 0.0
        %357 = vmatprep.subr.mxu0 0.0
        %358 = vmatpush2.msra.mxu0 0.0
        %359 = vmatprep.subr.mxu0 0.0
        %360 = vmatpush2.msra.mxu0 0.0
        %361 = vmatprep.subr.mxu0 0.0
        %362 = vmatpush2.msra.mxu0 0.0
        %363 = vmatprep.subr.mxu0 0.0
        %364 = vmatpush2.msra.mxu0 0.0
        %365 = vmatprep.subr.mxu0 0.0
        %366 = vmatpush2.msra.mxu0 %v302
        %367 = vmatprep.subr.mxu0 0.0
        %368 = vmatpush2.msra.mxu0 %v301
        %369 = vmatprep.subr.mxu0 0.0
        %370 = vmatpush2.msra.mxu0 %v300
        %371 = vmatprep.subr.mxu0 0.0
        %372 = vmatpush2.msra.mxu0 %v299
        %373 = vmatprep.subr.mxu0 0.0
        %374 = vmatpush2.msra.mxu0 %v298
        %375 = vmatprep.subr.mxu0 0.0
        %376 = vmatpush2.msra.mxu0 %v297
        %377 = vmatprep.subr.mxu0 0.0
        %378 = vmatpush2.msra.mxu0 %v296
        %379 = vmatprep.subr.mxu0 0.0
        %380 = vmatpush2.msra.mxu0 %v295
        %381 = vmatprep.mubr.f32.mxu0 %v312
        %382 = vmatmul.mubr.f32.gmra.mxu0 %v275
        %v383 = vpop.f32.mrf.mxu0
        %v384 = vadd.f32 %v308, %v383
        %v385 = vpop.f32.mrf.mxu0
        %386 = vmatprep.mubr.f32.mxu0 %v315
        %387 = vmatmul.mubr.f32.gmra.mxu0 %v277
        %v388 = vpop.f32.mrf.mxu0
        %v389 = vadd.f32 %v308, %v388
        %v390 = vpop.f32.mrf.mxu0
        %391 = vdwg.mxu0
        %v392 = vld [vmem:[#allocation7] sm:$0xff]
        %v393 = vld [vmem:[#allocation7 + $0x8] sm:$0xff]
        %v394 = vadd.f32 %v384, %v392
        %v395 = vadd.f32 %v389, %v393
        %396 = vst [vmem:[%s271] sm:$0xff] %v394
        %397 = vst [vmem:[%s271 + $0x8] sm:$0xff] %v395
        %s398 = sand.u32 %s140, 1
        %s399 = scalar_lea.sflag [#allocation4], %s398
        %s400 = sand.u32 %s140, 1
        %s401 = smul.addr %s400, 16
        %s402 = scalar_lea.vmem [#allocation8], %s401
        // Predicated region
        $region49: #{tpu_custom_call.1} parent=35 // pred_check
          %p403 = pneg %p150
        $region50: #{tpu_custom_call.1} parent=35 // pred_check_branch
          %405 = sbr.rel (%p403) target = $region52
        $region51: #{tpu_custom_call.1} parent=35 // pred_region
          %s406 = smul.u32 2, %s27
          %s408 = ssub.s32 256, 256
          %409 = vsyncadd %s399, %s408
          %s410 = smul.addr %s26, 2
          %s411 = sadd.s32 %s406, %s410
          %s412 = smul.addr %s411, 128
          %s413 = scalar_lea.hbm %s4, %s412
          %s414 = sshll.u32 %s402, 4
          %s415 = int_to_ptr.vmem [resolvable:$true] %s414
          %420 = dma.vmem_to_hbm [thread:$0]  %s415, 256, %s413, %s399, 128, 128, 8
        $region52: #{tpu_custom_call.1} parent=35 // pred_fallthru
          _
      $region36: #{tpu_custom_call.1} parent=5 // pred_fallthru
        _
      %p421 = scmp.le.s32.totalorder 2, %s17
      // Predicated region
      $region53: #{tpu_custom_call.1} parent=5 // pred_check
        %p422 = pneg %p421
      $region54: #{tpu_custom_call.1} parent=5 // pred_check_branch
        %424 = sbr.rel (%p422) target = $region56
      $region55: #{tpu_custom_call.1} parent=5 // pred_region
        %s425 = ssub.s32 %s17, 2
        // Predicated region
        $region57: #{tpu_custom_call.1} parent=55 // pred_check
          %p426 = pneg %p156
        $region58: #{tpu_custom_call.1} parent=55 // pred_check_branch
          %428 = sbr.rel (%p426) target = $region60
        $region59: #{tpu_custom_call.1} parent=55 // pred_region
          %s429 = sand.u32 %s141, 1
          %s430 = scalar_lea.sflag [#allocation4], %s429
          %s431 = sand.u32 %s141, 1
          %s432 = smul.addr %s431, 16
          %s433 = scalar_lea.vmem [#allocation8], %s432
          %434 = dma.done %s430, 256
        $region60: #{tpu_custom_call.1} parent=55 // pred_fallthru
          _
      $region56: #{tpu_custom_call.1} parent=5 // pred_fallthru
        _
    $region6: #{tpu_custom_call.1} parent=1 // loop_footer
      %s21 = sadd.s32 1, %s17
    $region7: #{tpu_custom_call.1} parent=1 // loop_footer_branch
      %16 = sbr.rel target = $region3
    $region8: #{tpu_custom_call.1} parent=1 // loop_exit
      _
    %435 = vsyncpa [#allocation3], 1
    %s436 = scalar_lea.sflag [#allocation3], 1
    %437 = vsyncpa %s436, 1
    %438 = vsyncpa [#allocation6], 1
    %439 = vsyncpa [#allocation4], 1
    %s440 = scalar_lea.sflag [#allocation4], 1
    %441 = vsyncpa %s440, 1

</llo_original>
